<compile_context>
chip_gen: v7x
topology: tpu7x:2x2x1
jax: 0.10.0
libtpu: 0.0.40
codegen_flags: <defaults>
</compile_context>

<pallas_src>
import inspect
from typing import NamedTuple

import jax
import jax.numpy as jnp
from jax.experimental import pallas as pl
from jax.experimental.pallas import tpu as pltpu


# ---------------------------------------------------------------------------
# Kernel
# ---------------------------------------------------------------------------
def _simclr_head_kernel(x_ref, w1_ref, b1_ref, w2_ref, b2_ref, o_ref):
    """One batch tile of the 2-layer projector.

    x_ref : (tb, in_dim)       activations (any float dtype; bf16 preferred)
    w1_ref: (in_dim, hidden)   pre-transposed weight, bf16 (or f32)
    b1_ref: (1, hidden)        f32 bias row
    w2_ref: (hidden, bn_pad)   pre-transposed weight, bf16 (or f32)
    b2_ref: (1, bn_pad)        f32 bias row (zero-padded columns)
    o_ref : (tb, bn_pad)       output tile
    """
    w1 = w1_ref[...]
    x = x_ref[...]
    if x.dtype != w1.dtype:               # static (trace-time) branch
        x = x.astype(w1.dtype)

    # Layer 1: standard [M,K]x[K,N] MXU matmul with f32 accumulation.
    h = jnp.dot(x, w1, preferred_element_type=jnp.float32)
    h = h + b1_ref[...]                   # f32 bias on the f32 accumulator

    # Layer 2: accumulator downcast once to the weight dtype (bf16 fast path;
    # stays f32 when f32 weights were prepared).
    w2 = w2_ref[...]
    y = jnp.dot(h.astype(w2.dtype), w2, preferred_element_type=jnp.float32)
    y = y + b2_ref[...]
    o_ref[...] = y.astype(o_ref.dtype)


# ---------------------------------------------------------------------------
# Parameter preparation (one-time, outside the per-call hot path)
# ---------------------------------------------------------------------------
class SimCLRHeadParams(NamedTuple):
    w1_t: jax.Array        # (in_dim, hidden_dim), weight_dtype
    b1: jax.Array          # (1, hidden_dim), f32
    w2_t: jax.Array        # (hidden_dim, bn_pad), weight_dtype
    b2: jax.Array          # (1, bn_pad), f32
    bottleneck_dim: int    # un-padded output feature count


def _ceil_div(a, b):
    return -(-a // b)


def prepare_simclr_params(w1, b1, w2, b2, *, weight_dtype=jnp.bfloat16):
    """Cast + pre-transpose PyTorch-layout parameters once.

    w1: (hidden_dim, in_dim), b1: (hidden_dim,)
    w2: (bottleneck_dim, hidden_dim), b2: (bottleneck_dim,)

    Default weight_dtype=bf16 halves weight HBM traffic / VMEM residency and
    removes per-step casts; pass jnp.float32 for a full-precision path.
    The bottleneck dim is padded to a multiple of 128 (lane-dense, unmasked
    stores); padded columns carry zero weights/bias and are sliced off later.
    """
    hidden_dim, in_dim = w1.shape
    bottleneck_dim, hidden_w = w2.shape
    assert hidden_w == hidden_dim, "w2 hidden dim must match w1 output dim"

    bn_pad = _ceil_div(bottleneck_dim, 128) * 128

    w1_t = jnp.asarray(w1, weight_dtype).T                     # (in, hidden)
    w2_t = jnp.asarray(w2, weight_dtype).T                     # (hidden, bn)
    b1_r = jnp.asarray(b1, jnp.float32).reshape(1, hidden_dim)
    b2_f = jnp.asarray(b2, jnp.float32)
    if bn_pad != bottleneck_dim:
        w2_t = jnp.pad(w2_t, ((0, 0), (0, bn_pad - bottleneck_dim)))
        b2_f = jnp.pad(b2_f, ((0, bn_pad - bottleneck_dim),))
    b2_r = b2_f.reshape(1, bn_pad)

    return SimCLRHeadParams(w1_t=w1_t, b1=b1_r, w2_t=w2_t, b2=b2_r,
                            bottleneck_dim=bottleneck_dim)


# ---------------------------------------------------------------------------
# pallas_call construction
# ---------------------------------------------------------------------------
try:
    _HAS_BUFFERED = (hasattr(pl, "Buffered") and
                     "pipeline_mode" in inspect.signature(pl.BlockSpec).parameters)
except Exception:  # signature introspection failure only
    _HAS_BUFFERED = hasattr(pl, "Buffered")


def _vmem_limit_bytes():
    """3/4 of physical VMEM: 48 MiB on v7x (64 MiB), 96 MiB on v5e/v6e."""
    cap = 64 * 1024 * 1024  # conservative default = v7x physical VMEM
    try:
        info = pltpu.get_tpu_info()
        cap = int(getattr(info, "vmem_capacity_bytes", cap))
    except Exception:  # hardware probe only; never masks compile errors
        pass
    return max(32 * 1024 * 1024, (cap * 3) // 4)


def _choose_tb(batch):
    """Balanced, MXU-friendly batch tiles (multiple of 8).

    cap=256 (512 for B>=1024) amortizes the ~0.35us/step pipeline overhead;
    balancing to ceil(B / n_steps) avoids padding waste (e.g. B=300 -> tb=152,
    not 256->512). No forced multi-step split at small batch: the small-batch
    regime is weight-DMA-bound, so megacore-splitting would only duplicate the
    full weight fetch.
    """
    if batch <= 8:
        return 8
    cap = 512 if batch >= 1024 else 256
    n_steps = _ceil_div(batch, cap)
    return _ceil_div(_ceil_div(batch, n_steps), 8) * 8


def _build_call(Bp, in_dim, hidden_dim, bn_pad, tb, out_dtype):
    if _HAS_BUFFERED:
        # Grid-invariant blocks (index_map -> (0,0) every step): single
        # buffering halves their VMEM residency (matters on v7x's 64 MiB).
        def const_spec(shape):
            return pl.BlockSpec(shape, lambda i: (0, 0),
                                pipeline_mode=pl.Buffered(1))
    else:
        def const_spec(shape):
            return pl.BlockSpec(shape, lambda i: (0, 0))

    return pl.pallas_call(
        _simclr_head_kernel,
        out_shape=jax.ShapeDtypeStruct((Bp, bn_pad), out_dtype),
        grid_spec=pltpu.PrefetchScalarGridSpec(
            num_scalar_prefetch=0,
            grid=(Bp // tb,),
            in_specs=[
                pl.BlockSpec((tb, in_dim), lambda i: (i, 0)),   # x (batch-tiled)
                const_spec((in_dim, hidden_dim)),               # W1^T (in, hidden)
                const_spec((1, hidden_dim)),                    # b1
                const_spec((hidden_dim, bn_pad)),               # W2^T (hidden, bn)
                const_spec((1, bn_pad)),                        # b2
            ],
            out_specs=pl.BlockSpec((tb, bn_pad), lambda i: (i, 0)),
        ),
        compiler_params=pltpu.CompilerParams(
            dimension_semantics=("parallel",),
            vmem_limit_bytes=_vmem_limit_bytes(),
        ),
    )


def simclr_head(x, params: SimCLRHeadParams, *, tb=None):
    """y = (x @ W1^T + b1) @ W2^T + b2 with prepared (pre-transposed) params.

    x: (B, in_dim) float32 or bfloat16 (bf16 is consumed without a cast).
    Returns (B, bottleneck_dim) in x.dtype.
    """
    B, in_dim = x.shape
    in_dim_w, hidden_dim = params.w1_t.shape
    hidden_w, bn_pad = params.w2_t.shape
    assert in_dim_w == in_dim and hidden_w == hidden_dim

    if tb is None:
        tb = _choose_tb(B)
    Bp = _ceil_div(B, tb) * tb
    x_p = x if Bp == B else jnp.pad(x, ((0, Bp - B), (0, 0)))

    out = _build_call(Bp, in_dim, hidden_dim, bn_pad, tb, x.dtype)(
        x_p, params.w1_t, params.b1, params.w2_t, params.b2)

    bn = params.bottleneck_dim
    if Bp != B or bn_pad != bn:
        out = out[:B, :bn]
    return out


# ---------------------------------------------------------------------------
# Demo / self-check
# ---------------------------------------------------------------------------
def _init_linear(key, out_dim, in_dim, dtype=jnp.float32):
    # Mimics PyTorch nn.Linear default init: U(-1/sqrt(in), 1/sqrt(in)).
    kw, kb = jax.random.split(key)
    bound = 1.0 / jnp.sqrt(jnp.asarray(in_dim, dtype))
    w = jax.random.uniform(kw, (out_dim, in_dim), dtype, -bound, bound)
    b = jax.random.uniform(kb, (out_dim,), dtype, -bound, bound)
    return w, b


if __name__ == "__main__":
    # Small shapes consistent with the module (in_dim -> hidden -> bottleneck).
    B, in_dim, hidden_dim, bottleneck_dim = 16, 64, 128, 32

    key = jax.random.PRNGKey(0)
    kx, k1, k2 = jax.random.split(key, 3)

    x = jax.random.normal(kx, (B, in_dim), jnp.float32)
    w1, b1 = _init_linear(k1, hidden_dim, in_dim)
    w2, b2 = _init_linear(k2, bottleneck_dim, hidden_dim)

    # One-time parameter preparation (bf16 cast + (in,out) transpose + lane
    # padding) outside the per-call hot path.
    params = prepare_simclr_params(w1, b1, w2, b2)

    out = jax.block_until_ready(simclr_head(x, params))

    # Pure-JAX reference with matching bf16 parameter precision, f32 math.
    # Tolerance covers the bf16 re-cast of the layer-1 accumulator.
    w1_f = w1.astype(jnp.bfloat16).astype(jnp.float32)
    w2_f = w2.astype(jnp.bfloat16).astype(jnp.float32)
    ref = (x @ w1_f.T + b1) @ w2_f.T + b2

    assert out.shape == (B, bottleneck_dim)
    assert out.dtype == x.dtype
    assert jnp.allclose(out, ref, atol=5e-2, rtol=5e-2), "mismatch vs reference"

    print("KERNEL_OK")
</pallas_src>

<mosaic_0001>
module attributes {stable_mosaic.version = 11 : i64} {
  func.func @_simclr_head_kernel(%arg0: i32, %arg1: memref<16x64xf32, #tpu.memory_space<vmem>>, %arg2: memref<64x128xbf16, #tpu.memory_space<vmem>>, %arg3: memref<1x128xf32, #tpu.memory_space<vmem>>, %arg4: memref<128x128xbf16, #tpu.memory_space<vmem>>, %arg5: memref<1x128xf32, #tpu.memory_space<vmem>>, %arg6: memref<16x128xf32, #tpu.memory_space<vmem>>) attributes {dimension_semantics = [#tpu.dimension_semantics<parallel>], iteration_bounds = array<i64: 1>, scalar_prefetch = 0 : i64, scratch_operands = 0 : i64, tpu.core_type = #tpu.core_type<tc>, window_params = [{transform_indices = @transform_0, window_bounds = array<i64: 16, 64>}, {pipeline_mode = #tpu.pipeline_mode<synchronous>, transform_indices = @transform_1, window_bounds = array<i64: 64, 128>}, {pipeline_mode = #tpu.pipeline_mode<synchronous>, transform_indices = @transform_2, window_bounds = array<i64: 1, 128>}, {pipeline_mode = #tpu.pipeline_mode<synchronous>, transform_indices = @transform_3, window_bounds = array<i64: 128, 128>}, {pipeline_mode = #tpu.pipeline_mode<synchronous>, transform_indices = @transform_4, window_bounds = array<i64: 1, 128>}, {transform_indices = @transform_5, window_bounds = array<i64: 16, 128>}]} {
    %c0 = arith.constant 0 : index
    %c0_0 = arith.constant 0 : index
    %0 = vector.load %arg2[%c0, %c0_0] : memref<64x128xbf16, #tpu.memory_space<vmem>>, vector<64x128xbf16>
    %c0_1 = arith.constant 0 : index
    %c0_2 = arith.constant 0 : index
    %1 = vector.load %arg1[%c0_1, %c0_2] : memref<16x64xf32, #tpu.memory_space<vmem>>, vector<16x64xf32>
    %2 = arith.truncf %1 : vector<16x64xf32> to vector<16x64xbf16>
    %cst = arith.constant dense<0.000000e+00> : vector<16x128xf32>
    %3 = tpu.matmul %2, %0, %cst {dimension_numbers = #tpu.dot_dimension_numbers<[1], [0], [0], [1], [0, 0, 1, 1], [], []>} : vector<16x64xbf16>, vector<64x128xbf16>, vector<16x128xf32> -> vector<16x128xf32>
    %c0_3 = arith.constant 0 : index
    %c0_4 = arith.constant 0 : index
    %4 = vector.load %arg3[%c0_3, %c0_4] : memref<1x128xf32, #tpu.memory_space<vmem>>, vector<1x128xf32>
    %5 = vector.broadcast %4 : vector<1x128xf32> to vector<16x128xf32>
    %6 = arith.addf %3, %5 : vector<16x128xf32>
    %c0_5 = arith.constant 0 : index
    %c0_6 = arith.constant 0 : index
    %7 = vector.load %arg4[%c0_5, %c0_6] : memref<128x128xbf16, #tpu.memory_space<vmem>>, vector<128x128xbf16>
    %8 = arith.truncf %6 : vector<16x128xf32> to vector<16x128xbf16>
    %cst_7 = arith.constant dense<0.000000e+00> : vector<16x128xf32>
    %9 = tpu.matmul %8, %7, %cst_7 {dimension_numbers = #tpu.dot_dimension_numbers<[1], [0], [0], [1], [0, 0, 1, 1], [], []>} : vector<16x128xbf16>, vector<128x128xbf16>, vector<16x128xf32> -> vector<16x128xf32>
    %c0_8 = arith.constant 0 : index
    %c0_9 = arith.constant 0 : index
    %10 = vector.load %arg5[%c0_8, %c0_9] : memref<1x128xf32, #tpu.memory_space<vmem>>, vector<1x128xf32>
    %11 = vector.broadcast %10 : vector<1x128xf32> to vector<16x128xf32>
    %12 = arith.addf %9, %11 : vector<16x128xf32>
    %c0_10 = arith.constant 0 : index
    %c0_11 = arith.constant 0 : index
    %13 = vector.load %arg6[%c0_10, %c0_11] : memref<16x128xf32, #tpu.memory_space<vmem>>, vector<16x128xf32>
    tpu.vector_store %arg6[%c0_10, %c0_11], %12 {strides = array<i32>} : memref<16x128xf32, #tpu.memory_space<vmem>>, vector<16x128xf32>,
    return
  }
  func.func @transform_0(%arg0: i32) -> (i32, i32) {
    %c0_i32 = arith.constant 0 : i32
    %c0_i32_0 = arith.constant 0 : i32
    return %arg0, %c0_i32 : i32, i32
  }
  func.func @transform_1(%arg0: i32) -> (i32, i32) {
    %c0_i32 = arith.constant 0 : i32
    %c0_i32_0 = arith.constant 0 : i32
    %c0_i32_1 = arith.constant 0 : i32
    return %c0_i32, %c0_i32_0 : i32, i32
  }
  func.func @transform_2(%arg0: i32) -> (i32, i32) {
    %c0_i32 = arith.constant 0 : i32
    %c0_i32_0 = arith.constant 0 : i32
    %c0_i32_1 = arith.constant 0 : i32
    return %c0_i32, %c0_i32_0 : i32, i32
  }
  func.func @transform_3(%arg0: i32) -> (i32, i32) {
    %c0_i32 = arith.constant 0 : i32
    %c0_i32_0 = arith.constant 0 : i32
    %c0_i32_1 = arith.constant 0 : i32
    return %c0_i32, %c0_i32_0 : i32, i32
  }
  func.func @transform_4(%arg0: i32) -> (i32, i32) {
    %c0_i32 = arith.constant 0 : i32
    %c0_i32_0 = arith.constant 0 : i32
    %c0_i32_1 = arith.constant 0 : i32
    return %c0_i32, %c0_i32_0 : i32, i32
  }
  func.func @transform_5(%arg0: i32) -> (i32, i32) {
    %c0_i32 = arith.constant 0 : i32
    %c0_i32_0 = arith.constant 0 : i32
    return %arg0, %c0_i32 : i32, i32
  }
}

</mosaic_0001>

<llo_original>
// kernel: tpu_custom_call.1
$region0: #{tpu_custom_call.1}
  #allocation0 [shape = 'u32[]', space=smem, size = 0x4, offset = 0x4, fixed_abs, tag = 'smem constant byte address 0x4 - core index']
  #allocation1 [shape = 'u32[144,128]{1,0:T(1,128)}', space=vmem, size = 0x12000, scoped, tag = 'internal scratch']
  %s0 = inlined_call_operand.hbm [shape: f32[16,64], index: 0, kind: input, shape index: {}]
  %s1 = inlined_call_operand.hbm [shape: bf16[64,128], index: 1, kind: input, shape index: {}]
  %s2 = inlined_call_operand.vmem [shape: f32[1,128], index: 2, kind: input, shape index: {}]
  %s3 = inlined_call_operand.hbm [shape: bf16[128,128], index: 3, kind: input, shape index: {}]
  %s4 = inlined_call_operand.vmem [shape: f32[1,128], index: 4, kind: input, shape index: {}]
  %s5 = inlined_call_operand.hbm [shape: f32[16,128], index: 5, kind: output, shape index: {}]
  %s6 = sld [smem:[#allocation0]]
  $region42: #{tpu_custom_call.1} parent=0
    _
  %s8 = ssub.s32 1, %s6
  %s9 = scalar_select 0, %s8, %s6
  $region1: #{tpu_custom_call.1} parent=0
    #allocation2 [shape = 'u8[8192]{0}', space=vmem, size = 0x2000, scoped, tag = 'input window, operand 0, single buffered']
    #allocation3 [shape = 's32[1]{0}', space=sflag, size = 0x4, scoped, tag = 'scoped memory for tpu_custom_call.1']
    #allocation4 [shape = 's32[1]{0}', space=sflag, size = 0x4, scoped, tag = 'scoped memory for tpu_custom_call.1']
    #allocation5 [shape = 'u8[16384]{0}', space=vmem, size = 0x4000, scoped, tag = 'input window, operand 1, single buffered']
    #allocation6 [shape = 's32[1]{0}', space=sflag, size = 0x4, scoped, tag = 'scoped memory for tpu_custom_call.1']
    #allocation7 [shape = 'u8[32768]{0}', space=vmem, size = 0x8000, scoped, tag = 'input window, operand 3, single buffered']
    #allocation8 [shape = 'u8[8192]{0}', space=vmem, size = 0x2000, scoped, tag = 'output window, operand 0, single buffered']
    %10 = vsyncpa [#allocation3], 0
    %11 = vsyncpa [#allocation6], 0
    %12 = vsyncpa [#allocation4], 0
    // Predicated region
    $region2: #{tpu_custom_call.1} parent=1 // pred_check
      _
    $region3: #{tpu_custom_call.1} parent=1 // pred_check_branch
      %14 = sbr.rel (0) target = $region5
    $region4: #{tpu_custom_call.1} parent=1 // pred_region
      %s16 = ssub.s32 256, 256
      %17 = vsyncadd [#allocation3], %s16
      %s18 = sshll.u32 [#allocation2], 4
      %s19 = int_to_ptr.vmem [resolvable:$true] %s18
      %24 = dma.hbm_to_vmem [thread:$0]  %s0, 256, %s19, [#allocation3], 128, 128, 8
    $region5: #{tpu_custom_call.1} parent=1 // pred_fallthru
      _
    // Predicated region
    $region6: #{tpu_custom_call.1} parent=1 // pred_check
      _
    $region7: #{tpu_custom_call.1} parent=1 // pred_check_branch
      %26 = sbr.rel (0) target = $region9
    $region8: #{tpu_custom_call.1} parent=1 // pred_region
      %s28 = ssub.s32 512, 512
      %29 = vsyncadd [#allocation6], %s28
      %s30 = sshll.u32 [#allocation5], 4
      %s31 = int_to_ptr.vmem [resolvable:$true] %s30
      %36 = dma.hbm_to_vmem [thread:$0]  %s1, 512, %s31, [#allocation6], 64, 64, 4
    $region9: #{tpu_custom_call.1} parent=1 // pred_fallthru
      _
    // Predicated region
    $region10: #{tpu_custom_call.1} parent=1 // pred_check
      _
    $region11: #{tpu_custom_call.1} parent=1 // pred_check_branch
      %38 = sbr.rel (0) target = $region13
    $region12: #{tpu_custom_call.1} parent=1 // pred_region
      _
    $region13: #{tpu_custom_call.1} parent=1 // pred_fallthru
      _
    // Predicated region
    $region14: #{tpu_custom_call.1} parent=1 // pred_check
      _
    $region15: #{tpu_custom_call.1} parent=1 // pred_check_branch
      %40 = sbr.rel (0) target = $region17
    $region16: #{tpu_custom_call.1} parent=1 // pred_region
      %s42 = ssub.s32 1024, 1024
      %43 = vsyncadd [#allocation6], %s42
      %s44 = sshll.u32 [#allocation7], 4
      %s45 = int_to_ptr.vmem [resolvable:$true] %s44
      %50 = dma.hbm_to_vmem [thread:$0]  %s3, 1024, %s45, [#allocation6], 64, 64, 4
    $region17: #{tpu_custom_call.1} parent=1 // pred_fallthru
      _
    // Predicated region
    $region18: #{tpu_custom_call.1} parent=1 // pred_check
      _
    $region19: #{tpu_custom_call.1} parent=1 // pred_check_branch
      %52 = sbr.rel (0) target = $region21
    $region20: #{tpu_custom_call.1} parent=1 // pred_region
      _
    $region21: #{tpu_custom_call.1} parent=1 // pred_fallthru
      _
    // Predicated region
    $region22: #{tpu_custom_call.1} parent=1 // pred_check
      _
    $region23: #{tpu_custom_call.1} parent=1 // pred_check_branch
      %54 = sbr.rel (0) target = $region25
    $region24: #{tpu_custom_call.1} parent=1 // pred_region
      %55 = dma.done [#allocation3], 256
    $region25: #{tpu_custom_call.1} parent=1 // pred_fallthru
      _
    // Predicated region
    $region26: #{tpu_custom_call.1} parent=1 // pred_check
      _
    $region27: #{tpu_custom_call.1} parent=1 // pred_check_branch
      %57 = sbr.rel (0) target = $region29
    $region28: #{tpu_custom_call.1} parent=1 // pred_region
      %58 = dma.done [#allocation6], 512
    $region29: #{tpu_custom_call.1} parent=1 // pred_fallthru
      _
    // Predicated region
    $region30: #{tpu_custom_call.1} parent=1 // pred_check
      _
    $region31: #{tpu_custom_call.1} parent=1 // pred_check_branch
      %60 = sbr.rel (0) target = $region33
    $region32: #{tpu_custom_call.1} parent=1 // pred_region
      %61 = dma.done [#allocation6], 1024
    $region33: #{tpu_custom_call.1} parent=1 // pred_fallthru
      _
    %v63 = vld [vmem:[#allocation5] sm:$0xf]
    %v64 = vld [vmem:[#allocation5 + $0x4] sm:$0xf]
    %v65 = vld [vmem:[#allocation5 + $0x8] sm:$0xf]
    %v66 = vld [vmem:[#allocation5 + $0xc] sm:$0xf]
    %v67 = vld [vmem:[#allocation5 + $0x10] sm:$0xf]
    %v68 = vld [vmem:[#allocation5 + $0x14] sm:$0xf]
    %v69 = vld [vmem:[#allocation5 + $0x18] sm:$0xf]
    %v70 = vld [vmem:[#allocation5 + $0x1c] sm:$0xf]
    %v71 = vld [vmem:[#allocation2] sm:$0xff]
    %v72 = vld [vmem:[#allocation2 + $0x8] sm:$0xff]
    %v73 = vpack.c.bf16 %v72, %v71
    %v74 = vld [vmem:[%s2] sm:$0x1]
    %v76 = vlaneseq
    %v77 = vshrl.u32 %v76, 7
    %v78 = vsub.s32 0, %v77
    %v79 = vrot.slane %v74, %v78
    %v89 = vunpack.c.l.b16 %v63
    %v90 = vunpack.c.l.b16 %v64
    %v91 = vunpack.c.l.b16 %v65
    %v92 = vunpack.c.l.b16 %v66
    %v93 = vunpack.c.l.b16 %v67
    %v94 = vunpack.c.l.b16 %v68
    %v95 = vunpack.c.l.b16 %v69
    %v96 = vunpack.c.l.b16 %v70
    %v97 = vpack.c.b16 %v90, %v89
    %v98 = vpack.c.b16 %v92, %v91
    %v99 = vpack.c.b16 %v94, %v93
    %v100 = vpack.c.b16 %v96, %v95
    %vm105 = vcmask 523264
    %v107 = vsel %vm105, %v73, 0
    %109 = vmatprep.subr.bf16.mxu0 0
    %110 = vmatpush1.bf16.msra.mxu0 %v97
    %111 = vmatprep.subr.bf16.mxu0 0
    %112 = vmatpush1.bf16.msra.mxu0 %v98
    %113 = vmatprep.subr.bf16.mxu0 0
    %114 = vmatpush1.bf16.msra.mxu0 %v99
    %115 = vmatprep.subr.bf16.mxu0 0
    %116 = vmatpush1.bf16.msra.mxu0 %v100
    %117 = vmatprep.subr.bf16.mxu0 0
    %118 = vmatpush1.bf16.msra.mxu0 0
    %119 = vmatprep.subr.bf16.mxu0 0
    %120 = vmatpush1.bf16.msra.mxu0 0
    %121 = vmatprep.subr.bf16.mxu0 0
    %122 = vmatpush1.bf16.msra.mxu0 0
    %123 = vmatprep.subr.bf16.mxu0 0
    %124 = vmatpush1.bf16.msra.mxu0 0
    %125 = vmatprep.subr.bf16.mxu0 0
    %126 = vmatpush1.bf16.msra.mxu0 0
    %127 = vmatprep.subr.bf16.mxu0 0
    %128 = vmatpush1.bf16.msra.mxu0 0
    %129 = vmatprep.subr.bf16.mxu0 0
    %130 = vmatpush1.bf16.msra.mxu0 0
    %131 = vmatprep.subr.bf16.mxu0 0
    %132 = vmatpush1.bf16.msra.mxu0 0
    %133 = vmatprep.subr.bf16.mxu0 0
    %134 = vmatpush1.bf16.msra.mxu0 0
    %135 = vmatprep.subr.bf16.mxu0 0
    %136 = vmatpush1.bf16.msra.mxu0 0
    %137 = vmatprep.subr.bf16.mxu0 0
    %138 = vmatpush1.bf16.msra.mxu0 0
    %139 = vmatprep.subr.bf16.mxu0 0
    %140 = vmatpush1.bf16.msra.mxu0 0
    %141 = vmatprep.mubr.bf16.mxu0 0
    %142 = vmatmul.mubr.bf16.gmra.mrb[0].mxu0 %v107
    %v143 = vpop.f32.mrb[0].mxu0
    %v144 = vadd.f32 %v79, %v143
    %v145 = vpop.f32.mrb[0].mxu0
    %v146 = vpop.f32.mrb[0].mxu0
    %v147 = vadd.f32 %v79, %v146
    %v148 = vpop.f32.mrb[0].mxu0
    %149 = vdwg.mxu0
    %v150 = vld [vmem:[#allocation7] sm:$0xf]
    %v151 = vld [vmem:[#allocation7 + $0x4] sm:$0xf]
    %v152 = vld [vmem:[#allocation7 + $0x8] sm:$0xf]
    %v153 = vld [vmem:[#allocation7 + $0xc] sm:$0xf]
    %v154 = vld [vmem:[#allocation7 + $0x10] sm:$0xf]
    %v155 = vld [vmem:[#allocation7 + $0x14] sm:$0xf]
    %v156 = vld [vmem:[#allocation7 + $0x18] sm:$0xf]
    %v157 = vld [vmem:[#allocation7 + $0x1c] sm:$0xf]
    %v158 = vld [vmem:[#allocation7 + $0x20] sm:$0xf]
    %v159 = vld [vmem:[#allocation7 + $0x24] sm:$0xf]
    %v160 = vld [vmem:[#allocation7 + $0x28] sm:$0xf]
    %v161 = vld [vmem:[#allocation7 + $0x2c] sm:$0xf]
    %v162 = vld [vmem:[#allocation7 + $0x30] sm:$0xf]
    %v163 = vld [vmem:[#allocation7 + $0x34] sm:$0xf]
    %v164 = vld [vmem:[#allocation7 + $0x38] sm:$0xf]
    %v165 = vld [vmem:[#allocation7 + $0x3c] sm:$0xf]
    %v166 = vpack.c.bf16 %v147, %v144
    %v167 = vld [vmem:[%s4] sm:$0x1]
    %v169 = vlaneseq
    %v170 = vshrl.u32 %v169, 7
    %v171 = vsub.s32 0, %v170
    %v172 = vrot.slane %v167, %v171
    %v190 = vunpack.c.l.b16 %v150
    %v191 = vunpack.c.l.b16 %v151
    %v192 = vunpack.c.l.b16 %v152
    %v193 = vunpack.c.l.b16 %v153
    %v194 = vunpack.c.l.b16 %v154
    %v195 = vunpack.c.l.b16 %v155
    %v196 = vunpack.c.l.b16 %v156
    %v197 = vunpack.c.l.b16 %v157
    %v198 = vunpack.c.l.b16 %v158
    %v199 = vunpack.c.l.b16 %v159
    %v200 = vunpack.c.l.b16 %v160
    %v201 = vunpack.c.l.b16 %v161
    %v202 = vunpack.c.l.b16 %v162
    %v203 = vunpack.c.l.b16 %v163
    %v204 = vunpack.c.l.b16 %v164
    %v205 = vunpack.c.l.b16 %v165
    %v206 = vpack.c.b16 %v191, %v190
    %v207 = vpack.c.b16 %v193, %v192
    %v208 = vpack.c.b16 %v195, %v194
    %v209 = vpack.c.b16 %v197, %v196
    %v210 = vpack.c.b16 %v199, %v198
    %v211 = vpack.c.b16 %v201, %v200
    %v212 = vpack.c.b16 %v203, %v202
    %v213 = vpack.c.b16 %v205, %v204
    %222 = vmatprep.subr.bf16.mxu0 0
    %223 = vmatpush1.bf16.msra.mxu0 %v206
    %224 = vmatprep.subr.bf16.mxu0 0
    %225 = vmatpush1.bf16.msra.mxu0 %v207
    %226 = vmatprep.subr.bf16.mxu0 0
    %227 = vmatpush1.bf16.msra.mxu0 %v208
    %228 = vmatprep.subr.bf16.mxu0 0
    %229 = vmatpush1.bf16.msra.mxu0 %v209
    %230 = vmatprep.subr.bf16.mxu0 0
    %231 = vmatpush1.bf16.msra.mxu0 %v210
    %232 = vmatprep.subr.bf16.mxu0 0
    %233 = vmatpush1.bf16.msra.mxu0 %v211
    %234 = vmatprep.subr.bf16.mxu0 0
    %235 = vmatpush1.bf16.msra.mxu0 %v212
    %236 = vmatprep.subr.bf16.mxu0 0
    %237 = vmatpush1.bf16.msra.mxu0 %v213
    %238 = vmatprep.subr.bf16.mxu0 0
    %239 = vmatpush1.bf16.msra.mxu0 0
    %240 = vmatprep.subr.bf16.mxu0 0
    %241 = vmatpush1.bf16.msra.mxu0 0
    %242 = vmatprep.subr.bf16.mxu0 0
    %243 = vmatpush1.bf16.msra.mxu0 0
    %244 = vmatprep.subr.bf16.mxu0 0
    %245 = vmatpush1.bf16.msra.mxu0 0
    %246 = vmatprep.subr.bf16.mxu0 0
    %247 = vmatpush1.bf16.msra.mxu0 0
    %248 = vmatprep.subr.bf16.mxu0 0
    %249 = vmatpush1.bf16.msra.mxu0 0
    %250 = vmatprep.subr.bf16.mxu0 0
    %251 = vmatpush1.bf16.msra.mxu0 0
    %252 = vmatprep.subr.bf16.mxu0 0
    %253 = vmatpush1.bf16.msra.mxu0 0
    %254 = vmatprep.mubr.bf16.mxu0 0
    %255 = vmatmul.mubr.bf16.gmra.mrb[0].mxu0 %v166
    %v256 = vpop.f32.mrb[0].mxu0
    %v257 = vadd.f32 %v172, %v256
    %v258 = vpop.f32.mrb[0].mxu0
    %v259 = vpop.f32.mrb[0].mxu0
    %v260 = vadd.f32 %v172, %v259
    %v261 = vpop.f32.mrb[0].mxu0
    %262 = vdwg.mxu0
    %263 = vst [vmem:[#allocation8] sm:$0xff] %v257
    %264 = vst [vmem:[#allocation8 + $0x8] sm:$0xff] %v260
    // Predicated region
    $region34: #{tpu_custom_call.1} parent=1 // pred_check
      _
    $region35: #{tpu_custom_call.1} parent=1 // pred_check_branch
      %266 = sbr.rel (0) target = $region37
    $region36: #{tpu_custom_call.1} parent=1 // pred_region
      %s268 = ssub.s32 256, 256
      %269 = vsyncadd [#allocation4], %s268
      %s270 = sshll.u32 [#allocation8], 4
      %s271 = int_to_ptr.vmem [resolvable:$true] %s270
      %276 = dma.vmem_to_hbm [thread:$0]  %s271, 256, %s5, [#allocation4], 128, 128, 8
    $region37: #{tpu_custom_call.1} parent=1 // pred_fallthru
      _
    // Predicated region
    $region38: #{tpu_custom_call.1} parent=1 // pred_check
      _
    $region39: #{tpu_custom_call.1} parent=1 // pred_check_branch
      %278 = sbr.rel (0) target = $region41
    $region40: #{tpu_custom_call.1} parent=1 // pred_region
      %279 = dma.done [#allocation4], 256
    $region41: #{tpu_custom_call.1} parent=1 // pred_fallthru
      _
    %280 = vsyncpa [#allocation3], 1
    %281 = vsyncpa [#allocation6], 1
    %282 = vsyncpa [#allocation4], 1

</llo_original>
